<compile_context>
chip_gen: v7x
topology: tpu7x:2x2x1
jax: 0.10.0
libtpu: 0.0.40
codegen_flags: <defaults>
</compile_context>

<pallas_src>
import functools

import jax
import jax.numpy as jnp
from jax import lax
from jax.experimental import pallas as pl
from jax.experimental.pallas import tpu as pltpu


def _cdiv(a, b):
    return (a + b - 1) // b


def _round_up(a, b):
    return _cdiv(a, b) * b


def _chip_budget():
    """Returns (block byte target, scoped-VMEM cap), generation-aware."""
    vmem_phys = None
    try:
        info = pltpu.get_tpu_info()
        vmem_phys = getattr(info, "vmem_capacity_bytes", None)
    except Exception:
        vmem_phys = None
    if vmem_phys is not None and vmem_phys <= (64 << 20):
        # v7x-like: ~3.2 TB/s per TC but only 64 MiB physical VMEM ->
        # larger blocks to amortize per-step overhead, tighter VMEM cap.
        return 2 << 20, 48 << 20
    # v5e / v6e (128 MiB physical VMEM): 1 MiB blocks already sit near roofline.
    return 1 << 20, 80 << 20


def _vmem_limit(per_step_io_bytes, per_step_f32_temp_bytes, cap):
    # double-buffered pipeline I/O + in-kernel f32 temps + headroom.
    need = 2 * per_step_io_bytes + per_step_f32_temp_bytes + (2 << 20)
    return int(min(cap, max(32 << 20, need)))


# ---------------------------------------------------------------------------
# Fast path: whole spatial plane resident per row block (single pass).
# ---------------------------------------------------------------------------
def _inorm_rows_kernel(x_ref, o_ref, *, epsilon):
    # Block: (R, L), L = H*W (lane-dense).  Only the f32 upcast of x is held
    # live; (x - mean) feeds the reduce and is recomputed at the write.
    x = x_ref[...].astype(jnp.float32)
    mean = jnp.mean(x, axis=-1, keepdims=True)
    var = jnp.mean(jnp.square(x - mean), axis=-1, keepdims=True)
    o_ref[...] = ((x - mean) * lax.rsqrt(var + epsilon)).astype(o_ref.dtype)


# ---------------------------------------------------------------------------
# Large-plane path: lane-tiled two-pass (stats kernel + apply kernel).
# ---------------------------------------------------------------------------
def _inorm_stats_kernel(x_ref, mean_ref, rstd_ref, sum_sc, sq_sc, *,
                        epsilon, inv_l, lane_tile, n_lanes, need_mask):
    j = pl.program_id(1)

    @pl.when(j == 0)
    def _():
        sum_sc[...] = jnp.zeros_like(sum_sc)
        sq_sc[...] = jnp.zeros_like(sq_sc)

    x = x_ref[...].astype(jnp.float32)
    if need_mask:
        lane = lax.broadcasted_iota(jnp.int32, x.shape, 1) + j * lane_tile
        x = jnp.where(lane < n_lanes, x, 0.0)
    sum_sc[...] += jnp.sum(x, axis=-1, keepdims=True)
    sq_sc[...] += jnp.sum(x * x, axis=-1, keepdims=True)

    @pl.when(j == pl.num_programs(1) - 1)
    def _():
        mean = sum_sc[...] * inv_l
        var = jnp.maximum(sq_sc[...] * inv_l - mean * mean, 0.0)
        mean_ref[...] = mean
        rstd_ref[...] = lax.rsqrt(var + epsilon)


def _inorm_apply_kernel(x_ref, mean_ref, rstd_ref, o_ref):
    x = x_ref[...].astype(jnp.float32)
    o_ref[...] = ((x - mean_ref[...]) * rstd_ref[...]).astype(o_ref.dtype)


# ---------------------------------------------------------------------------
# Wrapper
# ---------------------------------------------------------------------------
def instance_norm(x, epsilon=1e-8, *, target_bytes=None, lane_tiled=None):
    """Pallas TPU forward of the PyTorch InstanceNorm module.

    x: (N, C, H, W).  out = (x - mean(x,(2,3))) * rsqrt(mean((x-mean)^2,(2,3)) + eps)
    """
    N, C, H, W = x.shape
    P, L = N * C, H * W
    dtype = x.dtype
    itemsize = jnp.dtype(dtype).itemsize
    sub = max(8, 32 // max(itemsize, 1))     # sublane packing: 8/16/32 rows

    default_target, vmem_cap = _chip_budget()
    if target_bytes is None:
        target_bytes = default_target

    row_bytes = L * itemsize
    xf = x.reshape(P, L)

    # Single-pass only while a sublane-aligned row block stays within a few MiB;
    # otherwise the sublane floor (8/16/32 rows) would blow up the block.
    single_pass_ok = sub * row_bytes <= max(target_bytes, 4 << 20)
    if lane_tiled is None:
        lane_tiled = not single_pass_ok

    if not lane_tiled:
        rows = max(1, target_bytes // max(row_bytes, 1))
        rows = max(sub, (rows // sub) * sub)
        R = min(rows, _round_up(P, sub))
        # v7x megacore: ensure >= 2 parallel grid steps when the rows allow it.
        if _cdiv(P, R) == 1 and P > sub:
            R = _round_up(_cdiv(P, 2), sub)
        grid = (_cdiv(P, R),)

        per_step_io = 2 * R * L * itemsize          # one in + one out block
        per_step_f32 = 2 * R * L * 4                # f32 upcast + transient
        out = pl.pallas_call(
            functools.partial(_inorm_rows_kernel, epsilon=float(epsilon)),
            out_shape=jax.ShapeDtypeStruct((P, L), dtype),
            grid_spec=pltpu.PrefetchScalarGridSpec(
                num_scalar_prefetch=0,
                grid=grid,
                in_specs=[pl.BlockSpec((R, L), lambda i: (i, 0))],
                out_specs=pl.BlockSpec((R, L), lambda i: (i, 0)),
            ),
            compiler_params=pltpu.CompilerParams(
                dimension_semantics=("parallel",),
                vmem_limit_bytes=_vmem_limit(per_step_io, per_step_f32, vmem_cap),
            ),
            cost_estimate=pl.CostEstimate(
                flops=5 * P * L,
                transcendentals=P,
                bytes_accessed=2 * P * L * itemsize),
        )(xf)
        return out.reshape(N, C, H, W)

    # ----- lane-tiled two-pass path (very large H*W planes) -----
    R = sub
    TL = (target_bytes // max(R * itemsize, 1)) // 128 * 128
    TL = max(128, min(TL, _round_up(L, 128)))
    nR, nL = _cdiv(P, R), _cdiv(L, TL)
    need_mask = (L % TL) != 0

    stats_kernel = functools.partial(
        _inorm_stats_kernel, epsilon=float(epsilon), inv_l=1.0 / L,
        lane_tile=TL, n_lanes=L, need_mask=need_mask)
    per_step_io_s = R * TL * itemsize + 2 * R * 4
    per_step_f32 = 2 * R * TL * 4
    mean, rstd = pl.pallas_call(
        stats_kernel,
        out_shape=(jax.ShapeDtypeStruct((P, 1), jnp.float32),
                   jax.ShapeDtypeStruct((P, 1), jnp.float32)),
        grid_spec=pltpu.PrefetchScalarGridSpec(
            num_scalar_prefetch=0,
            grid=(nR, nL),
            in_specs=[pl.BlockSpec((R, TL), lambda i, j: (i, j))],
            out_specs=[pl.BlockSpec((R, 1), lambda i, j: (i, 0)),
                       pl.BlockSpec((R, 1), lambda i, j: (i, 0))],
            scratch_shapes=[pltpu.VMEM((R, 1), jnp.float32),
                            pltpu.VMEM((R, 1), jnp.float32)],
        ),
        compiler_params=pltpu.CompilerParams(
            dimension_semantics=("parallel", "arbitrary"),
            vmem_limit_bytes=_vmem_limit(per_step_io_s, per_step_f32, vmem_cap),
        ),
        cost_estimate=pl.CostEstimate(
            flops=3 * P * L,
            transcendentals=P,
            bytes_accessed=P * L * itemsize + 8 * P),
    )(xf)

    per_step_io_a = 2 * R * TL * itemsize + 2 * R * 4
    out = pl.pallas_call(
        _inorm_apply_kernel,
        out_shape=jax.ShapeDtypeStruct((P, L), dtype),
        grid_spec=pltpu.PrefetchScalarGridSpec(
            num_scalar_prefetch=0,
            grid=(nR, nL),
            in_specs=[pl.BlockSpec((R, TL), lambda i, j: (i, j)),
                      pl.BlockSpec((R, 1), lambda i, j: (i, 0)),
                      pl.BlockSpec((R, 1), lambda i, j: (i, 0))],
            out_specs=pl.BlockSpec((R, TL), lambda i, j: (i, j)),
        ),
        compiler_params=pltpu.CompilerParams(
            dimension_semantics=("parallel", "parallel"),
            vmem_limit_bytes=_vmem_limit(per_step_io_a, R * TL * 4, vmem_cap),
        ),
        cost_estimate=pl.CostEstimate(
            flops=2 * P * L,
            transcendentals=0,
            bytes_accessed=2 * P * L * itemsize + 8 * P),
    )(xf, mean, rstd)
    return out.reshape(N, C, H, W)


def instance_norm_ref(x, epsilon=1e-8):
    """Pure-JAX reference matching the PyTorch forward exactly."""
    x32 = x.astype(jnp.float32)
    mean = jnp.mean(x32, axis=(2, 3), keepdims=True)
    xc = x32 - mean
    var = jnp.mean(xc * xc, axis=(2, 3), keepdims=True)
    return (xc * lax.rsqrt(var + epsilon)).astype(x.dtype)


if __name__ == "__main__":
    key = jax.random.PRNGKey(0)
    # Small NCHW input consistent with the module's usage (image feature maps).
    x = jax.random.normal(key, (2, 4, 16, 16), dtype=jnp.float32)

    ref = instance_norm_ref(x)

    # Fast single-pass path (auto-selected for this shape).
    out = jax.block_until_ready(instance_norm(x))
    assert out.shape == x.shape and out.dtype == x.dtype
    assert jnp.allclose(out, ref, atol=1e-5, rtol=1e-5), "fast path mismatch"

    # Lane-tiled two-pass path, forced at a small shape so both code paths are
    # validated (auto-selected only for very large H*W planes).
    out_t = jax.block_until_ready(
        instance_norm(x, lane_tiled=True, target_bytes=4096))
    assert jnp.allclose(out_t, ref, atol=1e-4, rtol=1e-4), "tiled path mismatch"

    print("KERNEL_OK")
</pallas_src>

<mosaic_0001>
module attributes {stable_mosaic.version = 11 : i64} {
  func.func @_inorm_rows_kernel(%arg0: i32, %arg1: memref<8x256xf32, #tpu.memory_space<vmem>>, %arg2: memref<8x256xf32, #tpu.memory_space<vmem>>) attributes {dimension_semantics = [#tpu.dimension_semantics<parallel>], iteration_bounds = array<i64: 1>, scalar_prefetch = 0 : i64, scratch_operands = 0 : i64, tpu.core_type = #tpu.core_type<tc>, window_params = [{transform_indices = @transform_0, window_bounds = array<i64: 8, 256>}, {transform_indices = @transform_1, window_bounds = array<i64: 8, 256>}]} {
    %c0 = arith.constant 0 : index
    %c0_0 = arith.constant 0 : index
    %0 = vector.load %arg1[%c0, %c0_0] : memref<8x256xf32, #tpu.memory_space<vmem>>, vector<8x256xf32>
    %cst = arith.constant dense<0.000000e+00> : vector<8xf32>
    %1 = vector.multi_reduction <add>, %0, %cst [1] : vector<8x256xf32> to vector<8xf32>
    %2 = vector.shape_cast %1 : vector<8xf32> to vector<8x1xf32>
    %cst_1 = arith.constant 2.560000e+02 : f32
    %3 = vector.broadcast %cst_1 : f32 to vector<8x1xf32>
    %4 = arith.divf %2, %3 : vector<8x1xf32>
    %5 = vector.broadcast %4 : vector<8x1xf32> to vector<8x256xf32>
    %6 = arith.subf %0, %5 : vector<8x256xf32>
    %7 = arith.mulf %6, %6 : vector<8x256xf32>
    %cst_2 = arith.constant dense<0.000000e+00> : vector<8xf32>
    %8 = vector.multi_reduction <add>, %7, %cst_2 [1] : vector<8x256xf32> to vector<8xf32>
    %9 = vector.shape_cast %8 : vector<8xf32> to vector<8x1xf32>
    %cst_3 = arith.constant 2.560000e+02 : f32
    %10 = vector.broadcast %cst_3 : f32 to vector<8x1xf32>
    %11 = arith.divf %9, %10 : vector<8x1xf32>
    %12 = vector.broadcast %4 : vector<8x1xf32> to vector<8x256xf32>
    %13 = arith.subf %0, %12 : vector<8x256xf32>
    %cst_4 = arith.constant 9.99999993E-9 : f32
    %14 = vector.broadcast %cst_4 : f32 to vector<8x1xf32>
    %15 = arith.addf %11, %14 : vector<8x1xf32>
    %16 = math.rsqrt %15 : vector<8x1xf32>
    %17 = vector.broadcast %16 : vector<8x1xf32> to vector<8x256xf32>
    %18 = arith.mulf %13, %17 : vector<8x256xf32>
    %c0_5 = arith.constant 0 : index
    %c0_6 = arith.constant 0 : index
    %19 = vector.load %arg2[%c0_5, %c0_6] : memref<8x256xf32, #tpu.memory_space<vmem>>, vector<8x256xf32>
    tpu.vector_store %arg2[%c0_5, %c0_6], %18 {strides = array<i32>} : memref<8x256xf32, #tpu.memory_space<vmem>>, vector<8x256xf32>,
    return
  }
  func.func @transform_0(%arg0: i32) -> (i32, i32) {
    %c0_i32 = arith.constant 0 : i32
    %c0_i32_0 = arith.constant 0 : i32
    return %arg0, %c0_i32 : i32, i32
  }
  func.func @transform_1(%arg0: i32) -> (i32, i32) {
    %c0_i32 = arith.constant 0 : i32
    %c0_i32_0 = arith.constant 0 : i32
    return %arg0, %c0_i32 : i32, i32
  }
}

</mosaic_0001>

<llo_original>
// kernel: tpu_custom_call.1
$region0: #{tpu_custom_call.1}
  #allocation0 [shape = 'u32[]', space=smem, size = 0x4, offset = 0x4, fixed_abs, tag = 'smem constant byte address 0x4 - core index']
  #allocation1 [shape = 'u32[144,128]{1,0:T(1,128)}', space=vmem, size = 0x12000, scoped, tag = 'internal scratch']
  %s0 = inlined_call_operand.hbm [shape: f32[8,256], index: 0, kind: input, shape index: {}]
  %s1 = inlined_call_operand.hbm [shape: f32[8,256], index: 1, kind: output, shape index: {}]
  %s2 = sld [smem:[#allocation0]]
  $region18: #{tpu_custom_call.1} parent=0
    _
  %s4 = ssub.s32 1, %s2
  %s5 = scalar_select 0, %s4, %s2
  $region1: #{tpu_custom_call.1} parent=0
    #allocation2 [shape = 'u8[8192]{0}', space=vmem, size = 0x2000, scoped, tag = 'input window, operand 0, single buffered']
    #allocation3 [shape = 's32[1]{0}', space=sflag, size = 0x4, scoped, tag = 'scoped memory for tpu_custom_call.1']
    #allocation4 [shape = 's32[1]{0}', space=sflag, size = 0x4, scoped, tag = 'scoped memory for tpu_custom_call.1']
    #allocation5 [shape = 'u8[8192]{0}', space=vmem, size = 0x2000, scoped, tag = 'output window, operand 0, single buffered']
    %6 = vsyncpa [#allocation3], 0
    %7 = vsyncpa [#allocation4], 0
    // Predicated region
    $region2: #{tpu_custom_call.1} parent=1 // pred_check
      _
    $region3: #{tpu_custom_call.1} parent=1 // pred_check_branch
      %9 = sbr.rel (0) target = $region5
    $region4: #{tpu_custom_call.1} parent=1 // pred_region
      %s11 = ssub.s32 256, 256
      %12 = vsyncadd [#allocation3], %s11
      %s14 = sshll.u32 [#allocation2], 4
      %s15 = int_to_ptr.vmem [resolvable:$true] %s14
      %17 = dma.hbm_to_vmem [thread:$0]  %s0, 256, %s15, [#allocation3]
    $region5: #{tpu_custom_call.1} parent=1 // pred_fallthru
      _
    // Predicated region
    $region6: #{tpu_custom_call.1} parent=1 // pred_check
      _
    $region7: #{tpu_custom_call.1} parent=1 // pred_check_branch
      %19 = sbr.rel (0) target = $region9
    $region8: #{tpu_custom_call.1} parent=1 // pred_region
      %20 = dma.done [#allocation3], 256
    $region9: #{tpu_custom_call.1} parent=1 // pred_fallthru
      _
    %v21 = vld [vmem:[#allocation2] sm:$0xff]
    %v22 = vld [vmem:[#allocation2 + $0x8] sm:$0xff]
    %v23 = vadd.f32 %v21, %v22
    %24 = vadd.xlane.f32.xlu0 %v23
    %v25 = vpop.xlane.xlu0 %24
    %v26 = vrcp.pop 256.0
    %v27 = vmul.f32 %v25, %v26
    %v28 = vsub.f32 %v21, %v27
    %v29 = vsub.f32 %v22, %v27
    %v30 = vmul.f32 %v28, %v28
    %v31 = vmul.f32 %v29, %v29
    %v32 = vadd.f32 %v30, %v31
    %33 = vadd.xlane.f32.xlu0 %v32
    %v34 = vpop.xlane.xlu0 %33
    %v35 = vmul.f32 %v34, %v26
    %v36 = vadd.f32 %v35, 1e-08
    %v37 = vrsqrt.pop %v36
    %v38 = vmul.f32 %v28, %v37
    %v39 = vmul.f32 %v29, %v37
    %40 = vst [vmem:[#allocation5] sm:$0xff] %v38
    %41 = vst [vmem:[#allocation5 + $0x8] sm:$0xff] %v39
    // Predicated region
    $region10: #{tpu_custom_call.1} parent=1 // pred_check
      _
    $region11: #{tpu_custom_call.1} parent=1 // pred_check_branch
      %43 = sbr.rel (0) target = $region13
    $region12: #{tpu_custom_call.1} parent=1 // pred_region
      %s45 = ssub.s32 256, 256
      %46 = vsyncadd [#allocation4], %s45
      %s48 = sshll.u32 [#allocation5], 4
      %s49 = int_to_ptr.vmem [resolvable:$true] %s48
      %51 = dma.vmem_to_hbm [thread:$0]  %s49, 256, %s1, [#allocation4]
    $region13: #{tpu_custom_call.1} parent=1 // pred_fallthru
      _
    // Predicated region
    $region14: #{tpu_custom_call.1} parent=1 // pred_check
      _
    $region15: #{tpu_custom_call.1} parent=1 // pred_check_branch
      %53 = sbr.rel (0) target = $region17
    $region16: #{tpu_custom_call.1} parent=1 // pred_region
      %54 = dma.done [#allocation4], 256
    $region17: #{tpu_custom_call.1} parent=1 // pred_fallthru
      _
    %55 = vsyncpa [#allocation3], 1
    %56 = vsyncpa [#allocation4], 1

</llo_original>
